<compile_context>
chip_gen: v7x
topology: tpu7x:2x2x1
jax: 0.10.0
libtpu: 0.0.40
codegen_flags: <defaults>
</compile_context>

<pallas_src>
import functools

import jax
import jax.numpy as jnp
from jax.experimental import pallas as pl
from jax.experimental.pallas import tpu as pltpu


OUT_LANES = 128  # lane-dense output width; q1 lives in column 0, q2 in column 1


def _round_up(x, m):
    return ((x + m - 1) // m) * m


def _pad_to(x, shape):
    return jnp.pad(x, [(0, s - d) for d, s in zip(x.shape, shape)])


def _block_diag2(a, b):
    top = jnp.concatenate([a, jnp.zeros((a.shape[0], b.shape[1]), a.dtype)], axis=1)
    bot = jnp.concatenate([jnp.zeros((b.shape[0], a.shape[1]), b.dtype), b], axis=1)
    return jnp.concatenate([top, bot], axis=0)


# ---------------------------------------------------------------------------
# Kernel
# ---------------------------------------------------------------------------
def _qnet_kernel(s_ref, a_ref,
                 w14s_ref, w14a_ref, b14_ref,
                 w25_ref, b25_ref,
                 w36_ref, b36_ref,
                 out_ref):
    # Layer 1 (both heads fused along N); concat(state, action) is expressed as
    # the sum of two matmuls against the row-split weight.
    h = (jnp.dot(s_ref[...], w14s_ref[...], preferred_element_type=jnp.float32)
         + jnp.dot(a_ref[...], w14a_ref[...], preferred_element_type=jnp.float32)
         + b14_ref[...])
    h = jnp.maximum(h, 0.0)

    # Layer 2: block-diagonal (head1 | head2), one wide MXU push.
    h = jnp.dot(h, w25_ref[...], preferred_element_type=jnp.float32) + b25_ref[...]
    h = jnp.maximum(h, 0.0)

    # Layer 3: lane-dense output slab; columns 0/1 hold q1/q2, rest are zero.
    out_ref[...] = (jnp.dot(h, w36_ref[...], preferred_element_type=jnp.float32)
                    + b36_ref[...])


# ---------------------------------------------------------------------------
# Parameter init (matches PyTorch QNetwork + weights_init_) and fusion prep
# ---------------------------------------------------------------------------
def _xavier_uniform(key, fan_in, fan_out, dtype=jnp.float32):
    limit = jnp.sqrt(6.0 / (fan_in + fan_out))
    # stored as (in, out) so x @ W + b  ==  PyTorch x @ W.T + b
    return jax.random.uniform(key, (fan_in, fan_out), dtype, minval=-limit, maxval=limit)


def init_qnetwork_params(key, num_inputs, num_actions, hidden_dim):
    d_in = num_inputs + num_actions
    ks = jax.random.split(key, 6)
    return {
        "w1": _xavier_uniform(ks[0], d_in, hidden_dim),
        "b1": jnp.zeros((1, hidden_dim), jnp.float32),
        "w2": _xavier_uniform(ks[1], hidden_dim, hidden_dim),
        "b2": jnp.zeros((1, hidden_dim), jnp.float32),
        "w3": _xavier_uniform(ks[2], hidden_dim, 1),
        "b3": jnp.zeros((1, 1), jnp.float32),
        "w4": _xavier_uniform(ks[3], d_in, hidden_dim),
        "b4": jnp.zeros((1, hidden_dim), jnp.float32),
        "w5": _xavier_uniform(ks[4], hidden_dim, hidden_dim),
        "b5": jnp.zeros((1, hidden_dim), jnp.float32),
        "w6": _xavier_uniform(ks[5], hidden_dim, 1),
        "b6": jnp.zeros((1, 1), jnp.float32),
    }


def prepare_qnetwork_params(params, num_inputs, num_actions, hidden_dim):
    """Fuse the twin heads and zero-pad feature dims to 128 lanes (done once)."""
    del num_actions
    H = hidden_dim
    Hp = _round_up(H, 128)

    # Layer 1: (d_in, 2*Hp), split by rows into the state part and action part.
    w14 = jnp.concatenate(
        [_pad_to(params["w1"], (params["w1"].shape[0], Hp)),
         _pad_to(params["w4"], (params["w4"].shape[0], Hp))], axis=1)
    w14_s = w14[:num_inputs]
    w14_a = w14[num_inputs:]
    b14 = jnp.concatenate(
        [_pad_to(params["b1"], (1, Hp)), _pad_to(params["b4"], (1, Hp))], axis=1)

    # Layer 2: block-diagonal (2*Hp, 2*Hp).
    w25 = _block_diag2(_pad_to(params["w2"], (Hp, Hp)),
                       _pad_to(params["w5"], (Hp, Hp)))
    b25 = jnp.concatenate(
        [_pad_to(params["b2"], (1, Hp)), _pad_to(params["b5"], (1, Hp))], axis=1)

    # Layer 3: lane-dense (2*Hp, OUT_LANES); column 0 <- w3/b3, column 1 <- w6/b6.
    w36 = jnp.zeros((2 * Hp, OUT_LANES), jnp.float32)
    w36 = w36.at[:H, 0].set(params["w3"][:, 0])
    w36 = w36.at[Hp:Hp + H, 1].set(params["w6"][:, 0])
    b36 = jnp.zeros((1, OUT_LANES), jnp.float32)
    b36 = b36.at[0, 0].set(params["b3"][0, 0])
    b36 = b36.at[0, 1].set(params["b6"][0, 0])

    return {"w14_s": w14_s, "w14_a": w14_a, "b14": b14,
            "w25": w25, "b25": b25, "w36": w36, "b36": b36}


# ---------------------------------------------------------------------------
# Forward
# ---------------------------------------------------------------------------
@functools.partial(jax.jit, static_argnames=())
def qnetwork_forward(state, action, fused):
    """state: (B, num_inputs), action: (B, num_actions) -> (q1, q2) each (B, 1)."""
    B, ni = state.shape
    na = action.shape[1]
    twoHp = fused["w14_s"].shape[1]
    outp = fused["w36"].shape[1]

    # Batch tiling: multiple of 8 sublanes; keep per-tile buffers tiny vs.
    # v7x's 32 MiB scoped VMEM while still giving pipelining / 2-TC sharding.
    tile_b = min(256, _round_up(B, 8))
    b_pad = _round_up(B, tile_b)
    if b_pad != B:
        state = jnp.pad(state, ((0, b_pad - B), (0, 0)))
        action = jnp.pad(action, ((0, b_pad - B), (0, 0)))

    grid = (b_pad // tile_b,)

    flops = 2 * b_pad * (ni * twoHp + na * twoHp + twoHp * twoHp + twoHp * outp)
    bytes_accessed = 4 * (state.size + action.size
                          + sum(int(v.size) for v in fused.values())
                          + b_pad * outp)

    out = pl.pallas_call(
        _qnet_kernel,
        out_shape=jax.ShapeDtypeStruct((b_pad, outp), jnp.float32),
        grid_spec=pltpu.PrefetchScalarGridSpec(
            num_scalar_prefetch=0,
            grid=grid,
            in_specs=[
                pl.BlockSpec((tile_b, ni), lambda i: (i, 0)),       # state tile
                pl.BlockSpec((tile_b, na), lambda i: (i, 0)),       # action tile
                pl.BlockSpec((ni, twoHp), lambda i: (0, 0)),        # w14_s
                pl.BlockSpec((na, twoHp), lambda i: (0, 0)),        # w14_a
                pl.BlockSpec((1, twoHp), lambda i: (0, 0)),         # b14
                pl.BlockSpec((twoHp, twoHp), lambda i: (0, 0)),     # w25
                pl.BlockSpec((1, twoHp), lambda i: (0, 0)),         # b25
                pl.BlockSpec((twoHp, outp), lambda i: (0, 0)),      # w36
                pl.BlockSpec((1, outp), lambda i: (0, 0)),          # b36
            ],
            out_specs=pl.BlockSpec((tile_b, outp), lambda i: (i, 0)),
        ),
        compiler_params=pltpu.CompilerParams(
            dimension_semantics=("parallel",)),
        cost_estimate=pl.CostEstimate(flops=flops, transcendentals=0,
                                      bytes_accessed=bytes_accessed),
    )(state, action,
      fused["w14_s"], fused["w14_a"], fused["b14"],
      fused["w25"], fused["b25"], fused["w36"], fused["b36"])

    q1 = out[:B, 0:1]
    q2 = out[:B, 1:2]
    return q1, q2


# ---------------------------------------------------------------------------
# Pure-JAX reference (unfused, matches PyTorch forward semantics)
# ---------------------------------------------------------------------------
def _reference_forward(state, action, params):
    xu = jnp.concatenate([state, action], axis=1)
    h = jax.nn.relu(xu @ params["w1"] + params["b1"])
    h = jax.nn.relu(h @ params["w2"] + params["b2"])
    q1 = h @ params["w3"] + params["b3"]
    g = jax.nn.relu(xu @ params["w4"] + params["b4"])
    g = jax.nn.relu(g @ params["w5"] + params["b5"])
    q2 = g @ params["w6"] + params["b6"]
    return q1, q2


if __name__ == "__main__":
    num_inputs, num_actions, hidden_dim = 16, 16, 32
    batch = 8

    key = jax.random.PRNGKey(0)
    k_param, k_state, k_action = jax.random.split(key, 3)

    params = init_qnetwork_params(k_param, num_inputs, num_actions, hidden_dim)
    fused = prepare_qnetwork_params(params, num_inputs, num_actions, hidden_dim)

    state = jax.random.normal(k_state, (batch, num_inputs), jnp.float32)
    action = jax.random.normal(k_action, (batch, num_actions), jnp.float32)

    q1, q2 = qnetwork_forward(state, action, fused)
    jax.block_until_ready((q1, q2))

    r1, r2 = _reference_forward(state, action, params)
    assert q1.shape == (batch, 1) and q2.shape == (batch, 1)
    assert jnp.allclose(q1, r1, atol=1e-5), jnp.max(jnp.abs(q1 - r1))
    assert jnp.allclose(q2, r2, atol=1e-5), jnp.max(jnp.abs(q2 - r2))

    print("KERNEL_OK")
</pallas_src>

<mosaic_0001>
module attributes {stable_mosaic.version = 11 : i64} {
  func.func @_qnet_kernel(%arg0: i32, %arg1: memref<8x16xf32, #tpu.memory_space<vmem>>, %arg2: memref<8x16xf32, #tpu.memory_space<vmem>>, %arg3: memref<16x256xf32, #tpu.memory_space<vmem>>, %arg4: memref<16x256xf32, #tpu.memory_space<vmem>>, %arg5: memref<1x256xf32, #tpu.memory_space<vmem>>, %arg6: memref<256x256xf32, #tpu.memory_space<vmem>>, %arg7: memref<1x256xf32, #tpu.memory_space<vmem>>, %arg8: memref<256x128xf32, #tpu.memory_space<vmem>>, %arg9: memref<1x128xf32, #tpu.memory_space<vmem>>, %arg10: memref<8x128xf32, #tpu.memory_space<vmem>>) attributes {dimension_semantics = [#tpu.dimension_semantics<parallel>], iteration_bounds = array<i64: 1>, scalar_prefetch = 0 : i64, scratch_operands = 0 : i64, tpu.core_type = #tpu.core_type<tc>, window_params = [{transform_indices = @transform_0, window_bounds = array<i64: 8, 16>}, {transform_indices = @transform_1, window_bounds = array<i64: 8, 16>}, {pipeline_mode = #tpu.pipeline_mode<synchronous>, transform_indices = @transform_2, window_bounds = array<i64: 16, 256>}, {pipeline_mode = #tpu.pipeline_mode<synchronous>, transform_indices = @transform_3, window_bounds = array<i64: 16, 256>}, {pipeline_mode = #tpu.pipeline_mode<synchronous>, transform_indices = @transform_4, window_bounds = array<i64: 1, 256>}, {pipeline_mode = #tpu.pipeline_mode<synchronous>, transform_indices = @transform_5, window_bounds = array<i64: 256, 256>}, {pipeline_mode = #tpu.pipeline_mode<synchronous>, transform_indices = @transform_6, window_bounds = array<i64: 1, 256>}, {pipeline_mode = #tpu.pipeline_mode<synchronous>, transform_indices = @transform_7, window_bounds = array<i64: 256, 128>}, {pipeline_mode = #tpu.pipeline_mode<synchronous>, transform_indices = @transform_8, window_bounds = array<i64: 1, 128>}, {transform_indices = @transform_9, window_bounds = array<i64: 8, 128>}]} {
    %c0 = arith.constant 0 : index
    %c0_0 = arith.constant 0 : index
    %0 = vector.load %arg1[%c0, %c0_0] : memref<8x16xf32, #tpu.memory_space<vmem>>, vector<8x16xf32>
    %c0_1 = arith.constant 0 : index
    %c0_2 = arith.constant 0 : index
    %1 = vector.load %arg3[%c0_1, %c0_2] : memref<16x256xf32, #tpu.memory_space<vmem>>, vector<16x256xf32>
    %cst = arith.constant dense<0.000000e+00> : vector<8x256xf32>
    %2 = tpu.matmul %0, %1, %cst {dimension_numbers = #tpu.dot_dimension_numbers<[1], [0], [0], [1], [0, 0, 1, 1], [], []>} : vector<8x16xf32>, vector<16x256xf32>, vector<8x256xf32> -> vector<8x256xf32>
    %c0_3 = arith.constant 0 : index
    %c0_4 = arith.constant 0 : index
    %3 = vector.load %arg2[%c0_3, %c0_4] : memref<8x16xf32, #tpu.memory_space<vmem>>, vector<8x16xf32>
    %c0_5 = arith.constant 0 : index
    %c0_6 = arith.constant 0 : index
    %4 = vector.load %arg4[%c0_5, %c0_6] : memref<16x256xf32, #tpu.memory_space<vmem>>, vector<16x256xf32>
    %cst_7 = arith.constant dense<0.000000e+00> : vector<8x256xf32>
    %5 = tpu.matmul %3, %4, %cst_7 {dimension_numbers = #tpu.dot_dimension_numbers<[1], [0], [0], [1], [0, 0, 1, 1], [], []>} : vector<8x16xf32>, vector<16x256xf32>, vector<8x256xf32> -> vector<8x256xf32>
    %6 = arith.addf %2, %5 : vector<8x256xf32>
    %c0_8 = arith.constant 0 : index
    %c0_9 = arith.constant 0 : index
    %7 = vector.load %arg5[%c0_8, %c0_9] : memref<1x256xf32, #tpu.memory_space<vmem>>, vector<1x256xf32>
    %8 = vector.broadcast %7 : vector<1x256xf32> to vector<8x256xf32>
    %9 = arith.addf %6, %8 : vector<8x256xf32>
    %cst_10 = arith.constant 0.000000e+00 : f32
    %10 = vector.broadcast %cst_10 : f32 to vector<8x256xf32>
    %11 = arith.maximumf %9, %10 : vector<8x256xf32>
    %c0_11 = arith.constant 0 : index
    %c0_12 = arith.constant 0 : index
    %12 = vector.load %arg6[%c0_11, %c0_12] : memref<256x256xf32, #tpu.memory_space<vmem>>, vector<256x256xf32>
    %cst_13 = arith.constant dense<0.000000e+00> : vector<8x256xf32>
    %13 = tpu.matmul %11, %12, %cst_13 {dimension_numbers = #tpu.dot_dimension_numbers<[1], [0], [0], [1], [0, 0, 1, 1], [], []>} : vector<8x256xf32>, vector<256x256xf32>, vector<8x256xf32> -> vector<8x256xf32>
    %c0_14 = arith.constant 0 : index
    %c0_15 = arith.constant 0 : index
    %14 = vector.load %arg7[%c0_14, %c0_15] : memref<1x256xf32, #tpu.memory_space<vmem>>, vector<1x256xf32>
    %15 = vector.broadcast %14 : vector<1x256xf32> to vector<8x256xf32>
    %16 = arith.addf %13, %15 : vector<8x256xf32>
    %cst_16 = arith.constant 0.000000e+00 : f32
    %17 = vector.broadcast %cst_16 : f32 to vector<8x256xf32>
    %18 = arith.maximumf %16, %17 : vector<8x256xf32>
    %c0_17 = arith.constant 0 : index
    %c0_18 = arith.constant 0 : index
    %19 = vector.load %arg8[%c0_17, %c0_18] : memref<256x128xf32, #tpu.memory_space<vmem>>, vector<256x128xf32>
    %cst_19 = arith.constant dense<0.000000e+00> : vector<8x128xf32>
    %20 = tpu.matmul %18, %19, %cst_19 {dimension_numbers = #tpu.dot_dimension_numbers<[1], [0], [0], [1], [0, 0, 1, 1], [], []>} : vector<8x256xf32>, vector<256x128xf32>, vector<8x128xf32> -> vector<8x128xf32>
    %c0_20 = arith.constant 0 : index
    %c0_21 = arith.constant 0 : index
    %21 = vector.load %arg9[%c0_20, %c0_21] : memref<1x128xf32, #tpu.memory_space<vmem>>, vector<1x128xf32>
    %22 = vector.broadcast %21 : vector<1x128xf32> to vector<8x128xf32>
    %23 = arith.addf %20, %22 : vector<8x128xf32>
    %c0_22 = arith.constant 0 : index
    %c0_23 = arith.constant 0 : index
    %24 = vector.load %arg10[%c0_22, %c0_23] : memref<8x128xf32, #tpu.memory_space<vmem>>, vector<8x128xf32>
    tpu.vector_store %arg10[%c0_22, %c0_23], %23 {strides = array<i32>} : memref<8x128xf32, #tpu.memory_space<vmem>>, vector<8x128xf32>,
    return
  }
  func.func @transform_0(%arg0: i32) -> (i32, i32) {
    %c0_i32 = arith.constant 0 : i32
    %c0_i32_0 = arith.constant 0 : i32
    return %arg0, %c0_i32 : i32, i32
  }
  func.func @transform_1(%arg0: i32) -> (i32, i32) {
    %c0_i32 = arith.constant 0 : i32
    %c0_i32_0 = arith.constant 0 : i32
    return %arg0, %c0_i32 : i32, i32
  }
  func.func @transform_2(%arg0: i32) -> (i32, i32) {
    %c0_i32 = arith.constant 0 : i32
    %c0_i32_0 = arith.constant 0 : i32
    %c0_i32_1 = arith.constant 0 : i32
    return %c0_i32, %c0_i32_0 : i32, i32
  }
  func.func @transform_3(%arg0: i32) -> (i32, i32) {
    %c0_i32 = arith.constant 0 : i32
    %c0_i32_0 = arith.constant 0 : i32
    %c0_i32_1 = arith.constant 0 : i32
    return %c0_i32, %c0_i32_0 : i32, i32
  }
  func.func @transform_4(%arg0: i32) -> (i32, i32) {
    %c0_i32 = arith.constant 0 : i32
    %c0_i32_0 = arith.constant 0 : i32
    %c0_i32_1 = arith.constant 0 : i32
    return %c0_i32, %c0_i32_0 : i32, i32
  }
  func.func @transform_5(%arg0: i32) -> (i32, i32) {
    %c0_i32 = arith.constant 0 : i32
    %c0_i32_0 = arith.constant 0 : i32
    %c0_i32_1 = arith.constant 0 : i32
    return %c0_i32, %c0_i32_0 : i32, i32
  }
  func.func @transform_6(%arg0: i32) -> (i32, i32) {
    %c0_i32 = arith.constant 0 : i32
    %c0_i32_0 = arith.constant 0 : i32
    %c0_i32_1 = arith.constant 0 : i32
    return %c0_i32, %c0_i32_0 : i32, i32
  }
  func.func @transform_7(%arg0: i32) -> (i32, i32) {
    %c0_i32 = arith.constant 0 : i32
    %c0_i32_0 = arith.constant 0 : i32
    %c0_i32_1 = arith.constant 0 : i32
    return %c0_i32, %c0_i32_0 : i32, i32
  }
  func.func @transform_8(%arg0: i32) -> (i32, i32) {
    %c0_i32 = arith.constant 0 : i32
    %c0_i32_0 = arith.constant 0 : i32
    %c0_i32_1 = arith.constant 0 : i32
    return %c0_i32, %c0_i32_0 : i32, i32
  }
  func.func @transform_9(%arg0: i32) -> (i32, i32) {
    %c0_i32 = arith.constant 0 : i32
    %c0_i32_0 = arith.constant 0 : i32
    return %arg0, %c0_i32 : i32, i32
  }
}

</mosaic_0001>

<llo_original>
// kernel: qnetwork_forward.1
$region0: #{qnetwork_forward.1}
  #allocation0 [shape = 'u32[]', space=smem, size = 0x4, offset = 0x4, fixed_abs, tag = 'smem constant byte address 0x4 - core index']
  #allocation1 [shape = 'u32[144,128]{1,0:T(1,128)}', space=vmem, size = 0x12000, scoped, tag = 'internal scratch']
  %s0 = inlined_call_operand.hbm [shape: f32[8,16], index: 0, kind: input, shape index: {}]
  %s1 = inlined_call_operand.hbm [shape: f32[8,16], index: 1, kind: input, shape index: {}]
  %s2 = inlined_call_operand.hbm [shape: f32[16,256], index: 2, kind: input, shape index: {}]
  %s3 = inlined_call_operand.hbm [shape: f32[16,256], index: 3, kind: input, shape index: {}]
  %s4 = inlined_call_operand.vmem [shape: f32[1,256], index: 4, kind: input, shape index: {}]
  %s5 = inlined_call_operand.hbm [shape: f32[256,256], index: 5, kind: input, shape index: {}]
  %s6 = inlined_call_operand.vmem [shape: f32[1,256], index: 6, kind: input, shape index: {}]
  %s7 = inlined_call_operand.hbm [shape: f32[256,128], index: 7, kind: input, shape index: {}]
  %s8 = inlined_call_operand.vmem [shape: f32[1,128], index: 8, kind: input, shape index: {}]
  %s9 = inlined_call_operand.vmem [shape: f32[8,128], index: 9, kind: output, shape index: {}]
  %s10 = sld [smem:[#allocation0]]
  $region70: #{qnetwork_forward.1} parent=0
    _
  %s12 = ssub.s32 1, %s10
  %s13 = scalar_select 0, %s12, %s10
  $region1: #{qnetwork_forward.1} parent=0
    #allocation2 [shape = 'u8[4096]{0}', space=vmem, size = 0x1000, scoped, tag = 'input window, operand 0, single buffered']
    #allocation3 [shape = 's32[1]{0}', space=sflag, size = 0x4, scoped, tag = 'scoped memory for qnetwork_forward.1']
    #allocation4 [shape = 'u8[4096]{0}', space=vmem, size = 0x1000, scoped, tag = 'input window, operand 1, single buffered']
    #allocation5 [shape = 's32[1]{0}', space=sflag, size = 0x4, scoped, tag = 'scoped memory for qnetwork_forward.1']
    #allocation6 [shape = 'u8[16384]{0}', space=vmem, size = 0x4000, scoped, tag = 'input window, operand 2, single buffered']
    #allocation7 [shape = 'u8[16384]{0}', space=vmem, size = 0x4000, scoped, tag = 'input window, operand 3, single buffered']
    #allocation8 [shape = 's32[1]{0}', space=sflag, size = 0x4, scoped, tag = 'scoped memory for qnetwork_forward.1']
    #allocation9 [shape = 'u8[262144]{0}', space=vmem, size = 0x40000, scoped, tag = 'input window, operand 5, single buffered']
    #allocation10 [shape = 'u8[131072]{0}', space=vmem, size = 0x20000, scoped, tag = 'input window, operand 7, single buffered']
    #allocation11 [shape = 's32[1]{0}', space=sflag, size = 0x4, scoped, tag = 'scoped memory for qnetwork_forward.1']
    %14 = vsyncpa [#allocation3], 0
    %15 = vsyncpa [#allocation5], 0
    %16 = vsyncpa [#allocation8], 0
    %17 = vsyncpa [#allocation11], 0
    // Predicated region
    $region2: #{qnetwork_forward.1} parent=1 // pred_check
      _
    $region3: #{qnetwork_forward.1} parent=1 // pred_check_branch
      %19 = sbr.rel (0) target = $region5
    $region4: #{qnetwork_forward.1} parent=1 // pred_region
      %s21 = ssub.s32 128, 128
      %22 = vsyncadd [#allocation3], %s21
      %s24 = sshll.u32 [#allocation2], 4
      %s25 = int_to_ptr.vmem [resolvable:$true] %s24
      %27 = dma.hbm_to_vmem [thread:$0]  %s0, 128, %s25, [#allocation3]
    $region5: #{qnetwork_forward.1} parent=1 // pred_fallthru
      _
    // Predicated region
    $region6: #{qnetwork_forward.1} parent=1 // pred_check
      _
    $region7: #{qnetwork_forward.1} parent=1 // pred_check_branch
      %29 = sbr.rel (0) target = $region9
    $region8: #{qnetwork_forward.1} parent=1 // pred_region
      %s31 = ssub.s32 128, 128
      %32 = vsyncadd [#allocation5], %s31
      %s34 = sshll.u32 [#allocation4], 4
      %s35 = int_to_ptr.vmem [resolvable:$true] %s34
      %37 = dma.hbm_to_vmem [thread:$0]  %s1, 128, %s35, [#allocation5]
    $region9: #{qnetwork_forward.1} parent=1 // pred_fallthru
      _
    // Predicated region
    $region10: #{qnetwork_forward.1} parent=1 // pred_check
      _
    $region11: #{qnetwork_forward.1} parent=1 // pred_check_branch
      %39 = sbr.rel (0) target = $region13
    $region12: #{qnetwork_forward.1} parent=1 // pred_region
      %s41 = ssub.s32 512, 512
      %42 = vsyncadd [#allocation5], %s41
      %s43 = sshll.u32 [#allocation6], 4
      %s44 = int_to_ptr.vmem [resolvable:$true] %s43
      %49 = dma.hbm_to_vmem [thread:$0]  %s2, 512, %s44, [#allocation5], 256, 256, 16
    $region13: #{qnetwork_forward.1} parent=1 // pred_fallthru
      _
    // Predicated region
    $region14: #{qnetwork_forward.1} parent=1 // pred_check
      _
    $region15: #{qnetwork_forward.1} parent=1 // pred_check_branch
      %51 = sbr.rel (0) target = $region17
    $region16: #{qnetwork_forward.1} parent=1 // pred_region
      %s53 = ssub.s32 512, 512
      %54 = vsyncadd [#allocation8], %s53
      %s55 = sshll.u32 [#allocation7], 4
      %s56 = int_to_ptr.vmem [resolvable:$true] %s55
      %61 = dma.hbm_to_vmem [thread:$0]  %s3, 512, %s56, [#allocation8], 256, 256, 16
    $region17: #{qnetwork_forward.1} parent=1 // pred_fallthru
      _
    // Predicated region
    $region18: #{qnetwork_forward.1} parent=1 // pred_check
      _
    $region19: #{qnetwork_forward.1} parent=1 // pred_check_branch
      %63 = sbr.rel (0) target = $region21
    $region20: #{qnetwork_forward.1} parent=1 // pred_region
      _
    $region21: #{qnetwork_forward.1} parent=1 // pred_fallthru
      _
    // Predicated region
    $region22: #{qnetwork_forward.1} parent=1 // pred_check
      _
    $region23: #{qnetwork_forward.1} parent=1 // pred_check_branch
      %65 = sbr.rel (0) target = $region25
    $region24: #{qnetwork_forward.1} parent=1 // pred_region
      %s67 = ssub.s32 8192, 8192
      %68 = vsyncadd [#allocation8], %s67
      %s69 = sshll.u32 [#allocation9], 4
      %s70 = int_to_ptr.vmem [resolvable:$true] %s69
      %75 = dma.hbm_to_vmem [thread:$0]  %s5, 8192, %s70, [#allocation8], 256, 256, 16
    $region25: #{qnetwork_forward.1} parent=1 // pred_fallthru
      _
    // Predicated region
    $region26: #{qnetwork_forward.1} parent=1 // pred_check
      _
    $region27: #{qnetwork_forward.1} parent=1 // pred_check_branch
      %77 = sbr.rel (0) target = $region29
    $region28: #{qnetwork_forward.1} parent=1 // pred_region
      _
    $region29: #{qnetwork_forward.1} parent=1 // pred_fallthru
      _
    // Predicated region
    $region30: #{qnetwork_forward.1} parent=1 // pred_check
      _
    $region31: #{qnetwork_forward.1} parent=1 // pred_check_branch
      %79 = sbr.rel (0) target = $region33
    $region32: #{qnetwork_forward.1} parent=1 // pred_region
      %s81 = ssub.s32 4096, 4096
      %82 = vsyncadd [#allocation11], %s81
      %s83 = sshll.u32 [#allocation10], 4
      %s84 = int_to_ptr.vmem [resolvable:$true] %s83
      %89 = dma.hbm_to_vmem [thread:$0]  %s7, 4096, %s84, [#allocation11], 128, 128, 8
    $region33: #{qnetwork_forward.1} parent=1 // pred_fallthru
      _
    // Predicated region
    $region34: #{qnetwork_forward.1} parent=1 // pred_check
      _
    $region35: #{qnetwork_forward.1} parent=1 // pred_check_branch
      %91 = sbr.rel (0) target = $region37
    $region36: #{qnetwork_forward.1} parent=1 // pred_region
      _
    $region37: #{qnetwork_forward.1} parent=1 // pred_fallthru
      _
    // Predicated region
    $region38: #{qnetwork_forward.1} parent=1 // pred_check
      _
    $region39: #{qnetwork_forward.1} parent=1 // pred_check_branch
      %93 = sbr.rel (0) target = $region41
    $region40: #{qnetwork_forward.1} parent=1 // pred_region
      %94 = dma.done [#allocation3], 128
    $region41: #{qnetwork_forward.1} parent=1 // pred_fallthru
      _
    // Predicated region
    $region42: #{qnetwork_forward.1} parent=1 // pred_check
      _
    $region43: #{qnetwork_forward.1} parent=1 // pred_check_branch
      %96 = sbr.rel (0) target = $region45
    $region44: #{qnetwork_forward.1} parent=1 // pred_region
      %97 = dma.done [#allocation5], 128
    $region45: #{qnetwork_forward.1} parent=1 // pred_fallthru
      _
    // Predicated region
    $region46: #{qnetwork_forward.1} parent=1 // pred_check
      _
    $region47: #{qnetwork_forward.1} parent=1 // pred_check_branch
      %99 = sbr.rel (0) target = $region49
    $region48: #{qnetwork_forward.1} parent=1 // pred_region
      %100 = dma.done [#allocation5], 512
    $region49: #{qnetwork_forward.1} parent=1 // pred_fallthru
      _
    // Predicated region
    $region50: #{qnetwork_forward.1} parent=1 // pred_check
      _
    $region51: #{qnetwork_forward.1} parent=1 // pred_check_branch
      %102 = sbr.rel (0) target = $region53
    $region52: #{qnetwork_forward.1} parent=1 // pred_region
      %103 = dma.done [#allocation8], 512
    $region53: #{qnetwork_forward.1} parent=1 // pred_fallthru
      _
    // Predicated region
    $region54: #{qnetwork_forward.1} parent=1 // pred_check
      _
    $region55: #{qnetwork_forward.1} parent=1 // pred_check_branch
      %105 = sbr.rel (0) target = $region57
    $region56: #{qnetwork_forward.1} parent=1 // pred_region
      %106 = dma.done [#allocation8], 8192
    $region57: #{qnetwork_forward.1} parent=1 // pred_fallthru
      _
    // Predicated region
    $region58: #{qnetwork_forward.1} parent=1 // pred_check
      _
    $region59: #{qnetwork_forward.1} parent=1 // pred_check_branch
      %108 = sbr.rel (0) target = $region61
    $region60: #{qnetwork_forward.1} parent=1 // pred_region
      %109 = dma.done [#allocation11], 4096
    $region61: #{qnetwork_forward.1} parent=1 // pred_fallthru
      _
    %v110 = vld [vmem:[#allocation2] sm:$0xff]
    %v111 = vld [vmem:[#allocation6] sm:$0xff]
    %v112 = vld [vmem:[#allocation6 + $0x8] sm:$0xff]
    %v113 = vld [vmem:[#allocation6 + $0x10] sm:$0xff]
    %v114 = vld [vmem:[#allocation6 + $0x18] sm:$0xff]
    %v115 = vld [vmem:[#allocation4] sm:$0xff]
    %v116 = vld [vmem:[#allocation7] sm:$0xff]
    %v117 = vld [vmem:[#allocation7 + $0x8] sm:$0xff]
    %v118 = vld [vmem:[#allocation7 + $0x10] sm:$0xff]
    %v119 = vld [vmem:[#allocation7 + $0x18] sm:$0xff]
    %vm120 = vcmask 130048
    %v122 = vsel %vm120, %v115, 0
    %124 = vmatprep.subr.mxu0 %v117
    %125 = vmatpush1.msra.mxu0 %v116
    %126 = vmatprep.subr.mxu0 %v119
    %127 = vmatpush1.msra.mxu0 %v118
    %128 = vmatprep.subr.mxu0 0.0
    %129 = vmatpush1.msra.mxu0 0.0
    %130 = vmatprep.subr.mxu0 0.0
    %131 = vmatpush1.msra.mxu0 0.0
    %132 = vmatprep.subr.mxu0 0.0
    %133 = vmatpush1.msra.mxu0 0.0
    %134 = vmatprep.subr.mxu0 0.0
    %135 = vmatpush1.msra.mxu0 0.0
    %136 = vmatprep.subr.mxu0 0.0
    %137 = vmatpush1.msra.mxu0 0.0
    %138 = vmatprep.subr.mxu0 0.0
    %139 = vmatpush1.msra.mxu0 0.0
    %140 = vmatprep.subr.mxu0 0.0
    %141 = vmatpush1.msra.mxu0 0.0
    %142 = vmatprep.subr.mxu0 0.0
    %143 = vmatpush1.msra.mxu0 0.0
    %144 = vmatprep.subr.mxu0 0.0
    %145 = vmatpush1.msra.mxu0 0.0
    %146 = vmatprep.subr.mxu0 0.0
    %147 = vmatpush1.msra.mxu0 0.0
    %148 = vmatprep.subr.mxu0 0.0
    %149 = vmatpush1.msra.mxu0 0.0
    %150 = vmatprep.subr.mxu0 0.0
    %151 = vmatpush1.msra.mxu0 0.0
    %152 = vmatprep.subr.mxu0 0.0
    %153 = vmatpush1.msra.mxu0 0.0
    %154 = vmatprep.subr.mxu0 0.0
    %155 = vmatpush1.msra.mxu0 0.0
    %156 = vmatprep.subr.mxu0 0.0
    %157 = vmatpush1.msra.mxu0 0.0
    %158 = vmatprep.subr.mxu0 0.0
    %159 = vmatpush1.msra.mxu0 0.0
    %160 = vmatprep.subr.mxu0 0.0
    %161 = vmatpush1.msra.mxu0 0.0
    %162 = vmatprep.subr.mxu0 0.0
    %163 = vmatpush1.msra.mxu0 0.0
    %164 = vmatprep.subr.mxu0 0.0
    %165 = vmatpush1.msra.mxu0 0.0
    %166 = vmatprep.subr.mxu0 0.0
    %167 = vmatpush1.msra.mxu0 0.0
    %168 = vmatprep.subr.mxu0 0.0
    %169 = vmatpush1.msra.mxu0 0.0
    %170 = vmatprep.subr.mxu0 0.0
    %171 = vmatpush1.msra.mxu0 0.0
    %172 = vmatprep.subr.mxu0 0.0
    %173 = vmatpush1.msra.mxu0 0.0
    %174 = vmatprep.subr.mxu0 0.0
    %175 = vmatpush1.msra.mxu0 0.0
    %176 = vmatprep.subr.mxu0 0.0
    %177 = vmatpush1.msra.mxu0 0.0
    %178 = vmatprep.subr.mxu0 0.0
    %179 = vmatpush1.msra.mxu0 0.0
    %180 = vmatprep.subr.mxu0 0.0
    %181 = vmatpush1.msra.mxu0 0.0
    %182 = vmatprep.subr.mxu0 0.0
    %183 = vmatpush1.msra.mxu0 0.0
    %184 = vmatprep.subr.mxu0 0.0
    %185 = vmatpush1.msra.mxu0 0.0
    %186 = vmatprep.subr.mxu0 0.0
    %187 = vmatpush1.msra.mxu0 0.0
    %188 = vmatprep.mubr.f32.mxu0 0.0
    %189 = vmatmul.mubr.f32.gmra.mrb[0].mxu0 %v122
    %v190 = vpop.f32.mrb[0].mxu0
    %v191 = vadd.f32 0.0, %v190
    %v192 = vpop.f32.mrb[0].mxu0
    %v193 = vadd.f32 0.0, %v192
    %194 = vdwg.mxu0
    %v196 = vsel %vm120, %v110, 0
    %198 = vmatprep.subr.mxu0 %v112
    %199 = vmatpush1.msra.mxu0 %v111
    %200 = vmatprep.subr.mxu0 %v114
    %201 = vmatpush1.msra.mxu0 %v113
    %202 = vmatprep.subr.mxu0 0.0
    %203 = vmatpush1.msra.mxu0 0.0
    %204 = vmatprep.subr.mxu0 0.0
    %205 = vmatpush1.msra.mxu0 0.0
    %206 = vmatprep.subr.mxu0 0.0
    %207 = vmatpush1.msra.mxu0 0.0
    %208 = vmatprep.subr.mxu0 0.0
    %209 = vmatpush1.msra.mxu0 0.0
    %210 = vmatprep.subr.mxu0 0.0
    %211 = vmatpush1.msra.mxu0 0.0
    %212 = vmatprep.subr.mxu0 0.0
    %213 = vmatpush1.msra.mxu0 0.0
    %214 = vmatprep.subr.mxu0 0.0
    %215 = vmatpush1.msra.mxu0 0.0
    %216 = vmatprep.subr.mxu0 0.0
    %217 = vmatpush1.msra.mxu0 0.0
    %218 = vmatprep.subr.mxu0 0.0
    %219 = vmatpush1.msra.mxu0 0.0
    %220 = vmatprep.subr.mxu0 0.0
    %221 = vmatpush1.msra.mxu0 0.0
    %222 = vmatprep.subr.mxu0 0.0
    %223 = vmatpush1.msra.mxu0 0.0
    %224 = vmatprep.subr.mxu0 0.0
    %225 = vmatpush1.msra.mxu0 0.0
    %226 = vmatprep.subr.mxu0 0.0
    %227 = vmatpush1.msra.mxu0 0.0
    %228 = vmatprep.subr.mxu0 0.0
    %229 = vmatpush1.msra.mxu0 0.0
    %230 = vmatprep.subr.mxu0 0.0
    %231 = vmatpush1.msra.mxu0 0.0
    %232 = vmatprep.subr.mxu0 0.0
    %233 = vmatpush1.msra.mxu0 0.0
    %234 = vmatprep.subr.mxu0 0.0
    %235 = vmatpush1.msra.mxu0 0.0
    %236 = vmatprep.subr.mxu0 0.0
    %237 = vmatpush1.msra.mxu0 0.0
    %238 = vmatprep.subr.mxu0 0.0
    %239 = vmatpush1.msra.mxu0 0.0
    %240 = vmatprep.subr.mxu0 0.0
    %241 = vmatpush1.msra.mxu0 0.0
    %242 = vmatprep.subr.mxu0 0.0
    %243 = vmatpush1.msra.mxu0 0.0
    %244 = vmatprep.subr.mxu0 0.0
    %245 = vmatpush1.msra.mxu0 0.0
    %246 = vmatprep.subr.mxu0 0.0
    %247 = vmatpush1.msra.mxu0 0.0
    %248 = vmatprep.subr.mxu0 0.0
    %249 = vmatpush1.msra.mxu0 0.0
    %250 = vmatprep.subr.mxu0 0.0
    %251 = vmatpush1.msra.mxu0 0.0
    %252 = vmatprep.subr.mxu0 0.0
    %253 = vmatpush1.msra.mxu0 0.0
    %254 = vmatprep.subr.mxu0 0.0
    %255 = vmatpush1.msra.mxu0 0.0
    %256 = vmatprep.subr.mxu0 0.0
    %257 = vmatpush1.msra.mxu0 0.0
    %258 = vmatprep.subr.mxu0 0.0
    %259 = vmatpush1.msra.mxu0 0.0
    %260 = vmatprep.subr.mxu0 0.0
    %261 = vmatpush1.msra.mxu0 0.0
    %262 = vmatprep.mubr.f32.mxu0 0.0
    %263 = vmatmul.mubr.f32.gmra.mrb[0].mxu0 %v196
    %v264 = vpop.f32.mrb[0].mxu0
    %v265 = vadd.f32 %v191, %v264
    %v266 = vpop.f32.mrb[0].mxu0
    %v267 = vadd.f32 %v193, %v266
    %268 = vdwg.mxu0
    %v269 = vld [vmem:[%s4] sm:$0x3]
    %v271 = vlaneseq
    %v272 = vshrl.u32 %v271, 7
    %v273 = vsub.s32 0, %v272
    %v274 = vrot.slane %v269, %v273
    %v275 = vlaneseq
    %v276 = vshrl.u32 %v275, 7
    %v277 = vsub.s32 1, %v276
    %v278 = vrot.slane %v269, %v277
    %v281 = vadd.f32 %v265, %v274
    %v282 = vadd.f32 %v267, %v278
    %v283 = vmax.f32 %v281, 0.0
    %v284 = vmax.f32 %v282, 0.0
    %v285 = vld [vmem:[#allocation9] sm:$0xff]
    %v286 = vld [vmem:[#allocation9 + $0x8] sm:$0xff]
    %v287 = vld [vmem:[#allocation9 + $0x10] sm:$0xff]
    %v288 = vld [vmem:[#allocation9 + $0x18] sm:$0xff]
    %v289 = vld [vmem:[#allocation9 + $0x20] sm:$0xff]
    %v290 = vld [vmem:[#allocation9 + $0x28] sm:$0xff]
    %v291 = vld [vmem:[#allocation9 + $0x30] sm:$0xff]
    %v292 = vld [vmem:[#allocation9 + $0x38] sm:$0xff]
    %v293 = vld [vmem:[#allocation9 + $0x40] sm:$0xff]
    %v294 = vld [vmem:[#allocation9 + $0x48] sm:$0xff]
    %v295 = vld [vmem:[#allocation9 + $0x50] sm:$0xff]
    %v296 = vld [vmem:[#allocation9 + $0x58] sm:$0xff]
    %v297 = vld [vmem:[#allocation9 + $0x60] sm:$0xff]
    %v298 = vld [vmem:[#allocation9 + $0x68] sm:$0xff]
    %v299 = vld [vmem:[#allocation9 + $0x70] sm:$0xff]
    %v300 = vld [vmem:[#allocation9 + $0x78] sm:$0xff]
    %v301 = vld [vmem:[#allocation9 + $0x80] sm:$0xff]
    %v302 = vld [vmem:[#allocation9 + $0x88] sm:$0xff]
    %v303 = vld [vmem:[#allocation9 + $0x90] sm:$0xff]
    %v304 = vld [vmem:[#allocation9 + $0x98] sm:$0xff]
    %v305 = vld [vmem:[#allocation9 + $0xa0] sm:$0xff]
    %v306 = vld [vmem:[#allocation9 + $0xa8] sm:$0xff]
    %v307 = vld [vmem:[#allocation9 + $0xb0] sm:$0xff]
    %v308 = vld [vmem:[#allocation9 + $0xb8] sm:$0xff]
    %v309 = vld [vmem:[#allocation9 + $0xc0] sm:$0xff]
    %v310 = vld [vmem:[#allocation9 + $0xc8] sm:$0xff]
    %v311 = vld [vmem:[#allocation9 + $0xd0] sm:$0xff]
    %v312 = vld [vmem:[#allocation9 + $0xd8] sm:$0xff]
    %v313 = vld [vmem:[#allocation9 + $0xe0] sm:$0xff]
    %v314 = vld [vmem:[#allocation9 + $0xe8] sm:$0xff]
    %v315 = vld [vmem:[#allocation9 + $0xf0] sm:$0xff]
    %v316 = vld [vmem:[#allocation9 + $0xf8] sm:$0xff]
    %v317 = vld [vmem:[#allocation9 + $0x100] sm:$0xff]
    %v318 = vld [vmem:[#allocation9 + $0x108] sm:$0xff]
    %v319 = vld [vmem:[#allocation9 + $0x110] sm:$0xff]
    %v320 = vld [vmem:[#allocation9 + $0x118] sm:$0xff]
    %v321 = vld [vmem:[#allocation9 + $0x120] sm:$0xff]
    %v322 = vld [vmem:[#allocation9 + $0x128] sm:$0xff]
    %v323 = vld [vmem:[#allocation9 + $0x130] sm:$0xff]
    %v324 = vld [vmem:[#allocation9 + $0x138] sm:$0xff]
    %v325 = vld [vmem:[#allocation9 + $0x140] sm:$0xff]
    %v326 = vld [vmem:[#allocation9 + $0x148] sm:$0xff]
    %v327 = vld [vmem:[#allocation9 + $0x150] sm:$0xff]
    %v328 = vld [vmem:[#allocation9 + $0x158] sm:$0xff]
    %v329 = vld [vmem:[#allocation9 + $0x160] sm:$0xff]
    %v330 = vld [vmem:[#allocation9 + $0x168] sm:$0xff]
    %v331 = vld [vmem:[#allocation9 + $0x170] sm:$0xff]
    %v332 = vld [vmem:[#allocation9 + $0x178] sm:$0xff]
    %v333 = vld [vmem:[#allocation9 + $0x180] sm:$0xff]
    %v334 = vld [vmem:[#allocation9 + $0x188] sm:$0xff]
    %v335 = vld [vmem:[#allocation9 + $0x190] sm:$0xff]
    %v336 = vld [vmem:[#allocation9 + $0x198] sm:$0xff]
    %v337 = vld [vmem:[#allocation9 + $0x1a0] sm:$0xff]
    %v338 = vld [vmem:[#allocation9 + $0x1a8] sm:$0xff]
    %v339 = vld [vmem:[#allocation9 + $0x1b0] sm:$0xff]
    %v340 = vld [vmem:[#allocation9 + $0x1b8] sm:$0xff]
    %v341 = vld [vmem:[#allocation9 + $0x1c0] sm:$0xff]
    %v342 = vld [vmem:[#allocation9 + $0x1c8] sm:$0xff]
    %v343 = vld [vmem:[#allocation9 + $0x1d0] sm:$0xff]
    %v344 = vld [vmem:[#allocation9 + $0x1d8] sm:$0xff]
    %v345 = vld [vmem:[#allocation9 + $0x1e0] sm:$0xff]
    %v346 = vld [vmem:[#allocation9 + $0x1e8] sm:$0xff]
    %v347 = vld [vmem:[#allocation9 + $0x1f0] sm:$0xff]
    %v348 = vld [vmem:[#allocation9 + $0x1f8] sm:$0xff]
    %v349 = vld [vmem:[%s6] sm:$0x3]
    %v351 = vlaneseq
    %v352 = vshrl.u32 %v351, 7
    %v353 = vsub.s32 0, %v352
    %v354 = vrot.slane %v349, %v353
    %v355 = vlaneseq
    %v356 = vshrl.u32 %v355, 7
    %v357 = vsub.s32 1, %v356
    %v358 = vrot.slane %v349, %v357
    %361 = vmatprep.subr.mxu0 %v286
    %362 = vmatpush1.msra.mxu0 %v285
    %363 = vmatprep.subr.mxu0 %v288
    %364 = vmatpush1.msra.mxu0 %v287
    %365 = vmatprep.subr.mxu0 %v290
    %366 = vmatpush1.msra.mxu0 %v289
    %367 = vmatprep.subr.mxu0 %v292
    %368 = vmatpush1.msra.mxu0 %v291
    %369 = vmatprep.subr.mxu0 %v294
    %370 = vmatpush1.msra.mxu0 %v293
    %371 = vmatprep.subr.mxu0 %v296
    %372 = vmatpush1.msra.mxu0 %v295
    %373 = vmatprep.subr.mxu0 %v298
    %374 = vmatpush1.msra.mxu0 %v297
    %375 = vmatprep.subr.mxu0 %v300
    %376 = vmatpush1.msra.mxu0 %v299
    %377 = vmatprep.subr.mxu0 %v302
    %378 = vmatpush1.msra.mxu0 %v301
    %379 = vmatprep.subr.mxu0 %v304
    %380 = vmatpush1.msra.mxu0 %v303
    %381 = vmatprep.subr.mxu0 %v306
    %382 = vmatpush1.msra.mxu0 %v305
    %383 = vmatprep.subr.mxu0 %v308
    %384 = vmatpush1.msra.mxu0 %v307
    %385 = vmatprep.subr.mxu0 %v310
    %386 = vmatpush1.msra.mxu0 %v309
    %387 = vmatprep.subr.mxu0 %v312
    %388 = vmatpush1.msra.mxu0 %v311
    %389 = vmatprep.subr.mxu0 %v314
    %390 = vmatpush1.msra.mxu0 %v313
    %391 = vmatprep.subr.mxu0 %v316
    %392 = vmatpush1.msra.mxu0 %v315
    %393 = vmatprep.subr.mxu0 %v318
    %394 = vmatpush1.msra.mxu0 %v317
    %395 = vmatprep.subr.mxu0 %v320
    %396 = vmatpush1.msra.mxu0 %v319
    %397 = vmatprep.subr.mxu0 %v322
    %398 = vmatpush1.msra.mxu0 %v321
    %399 = vmatprep.subr.mxu0 %v324
    %400 = vmatpush1.msra.mxu0 %v323
    %401 = vmatprep.subr.mxu0 %v326
    %402 = vmatpush1.msra.mxu0 %v325
    %403 = vmatprep.subr.mxu0 %v328
    %404 = vmatpush1.msra.mxu0 %v327
    %405 = vmatprep.subr.mxu0 %v330
    %406 = vmatpush1.msra.mxu0 %v329
    %407 = vmatprep.subr.mxu0 %v332
    %408 = vmatpush1.msra.mxu0 %v331
    %409 = vmatprep.subr.mxu0 %v334
    %410 = vmatpush1.msra.mxu0 %v333
    %411 = vmatprep.subr.mxu0 %v336
    %412 = vmatpush1.msra.mxu0 %v335
    %413 = vmatprep.subr.mxu0 %v338
    %414 = vmatpush1.msra.mxu0 %v337
    %415 = vmatprep.subr.mxu0 %v340
    %416 = vmatpush1.msra.mxu0 %v339
    %417 = vmatprep.subr.mxu0 %v342
    %418 = vmatpush1.msra.mxu0 %v341
    %419 = vmatprep.subr.mxu0 %v344
    %420 = vmatpush1.msra.mxu0 %v343
    %421 = vmatprep.subr.mxu0 %v346
    %422 = vmatpush1.msra.mxu0 %v345
    %423 = vmatprep.subr.mxu0 %v348
    %424 = vmatpush1.msra.mxu0 %v347
    %425 = vmatprep.mubr.f32.mxu0 %v284
    %426 = vmatmul.mubr.f32.gmra.mrb[0].mxu0 %v283
    %v427 = vpop.f32.mrb[0].mxu0
    %v428 = vadd.f32 %v354, %v427
    %v429 = vpop.f32.mrb[0].mxu0
    %v430 = vadd.f32 %v358, %v429
    %431 = vdwg.mxu0
    %v432 = vmax.f32 %v428, 0.0
    %v433 = vmax.f32 %v430, 0.0
    %v434 = vld [vmem:[#allocation10] sm:$0xff]
    %v435 = vld [vmem:[#allocation10 + $0x8] sm:$0xff]
    %v436 = vld [vmem:[#allocation10 + $0x10] sm:$0xff]
    %v437 = vld [vmem:[#allocation10 + $0x18] sm:$0xff]
    %v438 = vld [vmem:[#allocation10 + $0x20] sm:$0xff]
    %v439 = vld [vmem:[#allocation10 + $0x28] sm:$0xff]
    %v440 = vld [vmem:[#allocation10 + $0x30] sm:$0xff]
    %v441 = vld [vmem:[#allocation10 + $0x38] sm:$0xff]
    %v442 = vld [vmem:[#allocation10 + $0x40] sm:$0xff]
    %v443 = vld [vmem:[#allocation10 + $0x48] sm:$0xff]
    %v444 = vld [vmem:[#allocation10 + $0x50] sm:$0xff]
    %v445 = vld [vmem:[#allocation10 + $0x58] sm:$0xff]
    %v446 = vld [vmem:[#allocation10 + $0x60] sm:$0xff]
    %v447 = vld [vmem:[#allocation10 + $0x68] sm:$0xff]
    %v448 = vld [vmem:[#allocation10 + $0x70] sm:$0xff]
    %v449 = vld [vmem:[#allocation10 + $0x78] sm:$0xff]
    %v450 = vld [vmem:[#allocation10 + $0x80] sm:$0xff]
    %v451 = vld [vmem:[#allocation10 + $0x88] sm:$0xff]
    %v452 = vld [vmem:[#allocation10 + $0x90] sm:$0xff]
    %v453 = vld [vmem:[#allocation10 + $0x98] sm:$0xff]
    %v454 = vld [vmem:[#allocation10 + $0xa0] sm:$0xff]
    %v455 = vld [vmem:[#allocation10 + $0xa8] sm:$0xff]
    %v456 = vld [vmem:[#allocation10 + $0xb0] sm:$0xff]
    %v457 = vld [vmem:[#allocation10 + $0xb8] sm:$0xff]
    %v458 = vld [vmem:[#allocation10 + $0xc0] sm:$0xff]
    %v459 = vld [vmem:[#allocation10 + $0xc8] sm:$0xff]
    %v460 = vld [vmem:[#allocation10 + $0xd0] sm:$0xff]
    %v461 = vld [vmem:[#allocation10 + $0xd8] sm:$0xff]
    %v462 = vld [vmem:[#allocation10 + $0xe0] sm:$0xff]
    %v463 = vld [vmem:[#allocation10 + $0xe8] sm:$0xff]
    %v464 = vld [vmem:[#allocation10 + $0xf0] sm:$0xff]
    %v465 = vld [vmem:[#allocation10 + $0xf8] sm:$0xff]
    %v466 = vld [vmem:[%s8] sm:$0x1]
    %v468 = vlaneseq
    %v469 = vshrl.u32 %v468, 7
    %v470 = vsub.s32 0, %v469
    %v471 = vrot.slane %v466, %v470
    %473 = vmatprep.subr.mxu0 0.0
    %474 = vmatpush1.msra.mxu0 %v434
    %475 = vmatprep.subr.mxu0 0.0
    %476 = vmatpush1.msra.mxu0 %v435
    %477 = vmatprep.subr.mxu0 0.0
    %478 = vmatpush1.msra.mxu0 %v436
    %479 = vmatprep.subr.mxu0 0.0
    %480 = vmatpush1.msra.mxu0 %v437
    %481 = vmatprep.subr.mxu0 0.0
    %482 = vmatpush1.msra.mxu0 %v438
    %483 = vmatprep.subr.mxu0 0.0
    %484 = vmatpush1.msra.mxu0 %v439
    %485 = vmatprep.subr.mxu0 0.0
    %486 = vmatpush1.msra.mxu0 %v440
    %487 = vmatprep.subr.mxu0 0.0
    %488 = vmatpush1.msra.mxu0 %v441
    %489 = vmatprep.subr.mxu0 0.0
    %490 = vmatpush1.msra.mxu0 %v442
    %491 = vmatprep.subr.mxu0 0.0
    %492 = vmatpush1.msra.mxu0 %v443
    %493 = vmatprep.subr.mxu0 0.0
    %494 = vmatpush1.msra.mxu0 %v444
    %495 = vmatprep.subr.mxu0 0.0
    %496 = vmatpush1.msra.mxu0 %v445
    %497 = vmatprep.subr.mxu0 0.0
    %498 = vmatpush1.msra.mxu0 %v446
    %499 = vmatprep.subr.mxu0 0.0
    %500 = vmatpush1.msra.mxu0 %v447
    %501 = vmatprep.subr.mxu0 0.0
    %502 = vmatpush1.msra.mxu0 %v448
    %503 = vmatprep.subr.mxu0 0.0
    %504 = vmatpush1.msra.mxu0 %v449
    %505 = vmatprep.subr.mxu0 0.0
    %506 = vmatpush1.msra.mxu0 %v450
    %507 = vmatprep.subr.mxu0 0.0
    %508 = vmatpush1.msra.mxu0 %v451
    %509 = vmatprep.subr.mxu0 0.0
    %510 = vmatpush1.msra.mxu0 %v452
    %511 = vmatprep.subr.mxu0 0.0
    %512 = vmatpush1.msra.mxu0 %v453
    %513 = vmatprep.subr.mxu0 0.0
    %514 = vmatpush1.msra.mxu0 %v454
    %515 = vmatprep.subr.mxu0 0.0
    %516 = vmatpush1.msra.mxu0 %v455
    %517 = vmatprep.subr.mxu0 0.0
    %518 = vmatpush1.msra.mxu0 %v456
    %519 = vmatprep.subr.mxu0 0.0
    %520 = vmatpush1.msra.mxu0 %v457
    %521 = vmatprep.subr.mxu0 0.0
    %522 = vmatpush1.msra.mxu0 %v458
    %523 = vmatprep.subr.mxu0 0.0
    %524 = vmatpush1.msra.mxu0 %v459
    %525 = vmatprep.subr.mxu0 0.0
    %526 = vmatpush1.msra.mxu0 %v460
    %527 = vmatprep.subr.mxu0 0.0
    %528 = vmatpush1.msra.mxu0 %v461
    %529 = vmatprep.subr.mxu0 0.0
    %530 = vmatpush1.msra.mxu0 %v462
    %531 = vmatprep.subr.mxu0 0.0
    %532 = vmatpush1.msra.mxu0 %v463
    %533 = vmatprep.subr.mxu0 0.0
    %534 = vmatpush1.msra.mxu0 %v464
    %535 = vmatprep.subr.mxu0 0.0
    %536 = vmatpush1.msra.mxu0 %v465
    %537 = vmatprep.mubr.f32.mxu0 %v433
    %538 = vmatmul.mubr.f32.gmra.mrb[0].mxu0 %v432
    %v539 = vpop.f32.mrb[0].mxu0
    %v540 = vadd.f32 %v471, %v539
    %v541 = vpop.f32.mrb[0].mxu0
    %542 = vdwg.mxu0
    %543 = vst [vmem:[%s9] sm:$0xff] %v540
    // Predicated region
    $region62: #{qnetwork_forward.1} parent=1 // pred_check
      _
    $region63: #{qnetwork_forward.1} parent=1 // pred_check_branch
      %545 = sbr.rel (0) target = $region65
    $region64: #{qnetwork_forward.1} parent=1 // pred_region
      _
    $region65: #{qnetwork_forward.1} parent=1 // pred_fallthru
      _
    // Predicated region
    $region66: #{qnetwork_forward.1} parent=1 // pred_check
      _
    $region67: #{qnetwork_forward.1} parent=1 // pred_check_branch
      %547 = sbr.rel (0) target = $region69
    $region68: #{qnetwork_forward.1} parent=1 // pred_region
      _
    $region69: #{qnetwork_forward.1} parent=1 // pred_fallthru
      _
    %548 = vsyncpa [#allocation3], 1
    %549 = vsyncpa [#allocation5], 1
    %550 = vsyncpa [#allocation8], 1
    %551 = vsyncpa [#allocation11], 1

</llo_original>
